<compile_context>
chip_gen: v6e
topology: v6e:2x2x1
jax: 0.10.0
libtpu: 0.0.40
codegen_flags: <defaults>
</compile_context>

<pallas_src>
import math

import jax
import jax.numpy as jnp
from jax.experimental import pallas as pl
from jax.experimental.pallas import tpu as pltpu


# --------------------------------------------------------------------------
# hardware / spec helpers
# --------------------------------------------------------------------------
def _tpu_vmem_bytes():
    """Physical VMEM capacity (fallback: 128 MiB, the v5e/v6e value)."""
    try:
        return int(pltpu.get_tpu_info().vmem_capacity_bytes)
    except Exception:
        return 128 << 20


def _compiler_params(sem, block_bytes):
    """Generation-aware VMEM budget derived from the actual chip."""
    cap = _tpu_vmem_bytes()
    hi = int(0.85 * cap)
    limit = min(hi, max(32 << 20, 6 * int(block_bytes)))
    return pltpu.CompilerParams(dimension_semantics=sem,
                                vmem_limit_bytes=limit)


def _copy_smoke_kernel(a_ref, o_ref):
    o_ref[...] = a_ref[...]


_BUFFERED_OK = None


def _buffered_const_supported():
    """Runtime check that pipeline_mode=pl.Buffered(1) lowers on this setup."""
    global _BUFFERED_OK
    if _BUFFERED_OK is None:
        try:
            spec = pl.BlockSpec((8, 128), lambda i: (0, 0),
                                pipeline_mode=pl.Buffered(1))
            out = pl.pallas_call(
                _copy_smoke_kernel, grid=(1,), in_specs=[spec],
                out_specs=pl.BlockSpec((8, 128), lambda i: (0, 0)),
                out_shape=jax.ShapeDtypeStruct((8, 128), jnp.float32),
            )(jnp.zeros((8, 128), jnp.float32))
            jax.block_until_ready(out)
            _BUFFERED_OK = True
        except Exception:
            _BUFFERED_OK = False
    return _BUFFERED_OK


def _const_spec(block_shape):
    """Spec for an operand whose block never changes over the 2-D grid.

    Single-buffered (when supported) so constant weights / folded BN scales /
    biases are not pointlessly double-buffered in VMEM.
    """
    index_map = lambda i, j: (0,) * len(block_shape)
    if _buffered_const_supported():
        return pl.BlockSpec(block_shape, index_map,
                            pipeline_mode=pl.Buffered(1))
    return pl.BlockSpec(block_shape, index_map)


def _pick_l_tile(L):
    """Lane-dense length tile for the streaming passes (A and C)."""
    if L % 128 != 0:
        return L
    cap = 1024 if _tpu_vmem_bytes() <= (64 << 20) else 2048
    for t in (2048, 1024, 512, 256, 128):
        if t <= cap and t <= L and L % t == 0:
            return t
    return L


def _pick_conv_l_tile(L, halo):
    """Length tile for the conv pass (B); whole L unless tiling is viable."""
    if L % 128 != 0 or halo > 128:
        return L
    cap = 512 if _tpu_vmem_bytes() <= (64 << 20) else 1024
    if L <= cap:
        return L
    for t in (1024, 512, 256, 128):
        if t <= cap and L % t == 0:
            return t
    return L


# --------------------------------------------------------------------------
# pass A: BN1 statistics, accumulated over length tiles in VMEM scratch
# --------------------------------------------------------------------------
def _stats_kernel(x_ref, s_ref, acc_ref):
    j = pl.program_id(1)

    @pl.when(j == 0)
    def _():
        acc_ref[...] = jnp.zeros_like(acc_ref)

    xb = x_ref[0].astype(jnp.float32)                 # (C, Lt)
    acc_ref[0, :] += jnp.sum(xb, axis=1)              # sum
    acc_ref[1, :] += jnp.sum(xb * xb, axis=1)         # sum of squares

    @pl.when(j == pl.num_programs(1) - 1)
    def _():
        s_ref[0] = acc_ref[...]                       # (2, C), lane-dense


# --------------------------------------------------------------------------
# pass B: BN1+ReLU + dilated 'same' conv (+bias) + partial BN2 statistics
# --------------------------------------------------------------------------
def _make_conv_kernel(K, dil, L, lt, hb, use_halo):
    center = (K - 1) // 2
    offs = [(t - center) * dil for t in range(K)]

    def _bn_relu(x_raw, sc, sh):
        # Elementwise work stays f32 (v5e VPU has no bf16 path).
        return jnp.maximum(x_raw.astype(jnp.float32) * sc + sh, 0.0)

    def _body(j, x_ref, xl_ref, xr_ref, sc1_ref, sh1_ref, w1_ref, c1b_ref,
              t_ref, s2_ref):
        sc = sc1_ref[...]                             # (C, 1) f32
        sh = sh1_ref[...]
        h = _bn_relu(x_ref[0], sc, sh)                # (C, lt) f32
        C = h.shape[0]
        Cb = w1_ref.shape[1]
        if use_halo:
            h_l = _bn_relu(xl_ref[0], sc, sh)         # (C, hb)
            h_r = _bn_relu(xr_ref[0], sc, sh)
        lane = jax.lax.broadcasted_iota(jnp.int32, (C, lt), 1)

        acc = jnp.zeros((Cb, lt), jnp.float32)
        for t, off in enumerate(offs):
            if off == 0:
                op = h
            else:
                # Lane shift via XLU roll; zero-fill / halo-fill via selects.
                rc = pltpu.roll(h, (-off) % lt, axis=1)
                in_cur = jnp.logical_and(lane + off >= 0, lane + off < lt)
                if use_halo:
                    h_nb = h_r if off > 0 else h_l
                    rn = pltpu.roll(h_nb, (-off) % hb, axis=1)
                    reps = lt // hb
                    nb = rn if reps == 1 else jnp.concatenate([rn] * reps,
                                                              axis=1)
                    gpos = j * lt + lane + off        # global column index
                    valid = jnp.logical_and(gpos >= 0, gpos < L)
                    op = jnp.where(in_cur, rc, jnp.where(valid, nb, 0.0))
                else:
                    op = jnp.where(in_cur, rc, 0.0)
            # Per-tap accumulating MXU dot (bf16 operands, f32 accumulate).
            acc = acc + jnp.dot(w1_ref[t], op.astype(jnp.bfloat16),
                                preferred_element_type=jnp.float32)

        tb = acc + c1b_ref[...]                       # (Cb, lt) f32
        t_ref[0] = tb.astype(t_ref.dtype)             # bf16 intermediate
        # BN2 partial statistics from the f32 accumulator, lane-dense rows.
        s2_ref[0, 0, 0, :] = jnp.sum(tb, axis=1)
        s2_ref[0, 0, 1, :] = jnp.sum(tb * tb, axis=1)

    if use_halo:
        def kernel(x_ref, xl_ref, xr_ref, sc1_ref, sh1_ref, w1_ref, c1b_ref,
                   t_ref, s2_ref):
            _body(pl.program_id(1), x_ref, xl_ref, xr_ref, sc1_ref, sh1_ref,
                  w1_ref, c1b_ref, t_ref, s2_ref)
    else:
        def kernel(x_ref, sc1_ref, sh1_ref, w1_ref, c1b_ref, t_ref, s2_ref):
            _body(pl.program_id(1), x_ref, None, None, sc1_ref, sh1_ref,
                  w1_ref, c1b_ref, t_ref, s2_ref)
    return kernel


# --------------------------------------------------------------------------
# pass C: BN2 + ReLU + 1x1 conv + bias + residual add
# --------------------------------------------------------------------------
def _pointwise_kernel(x_ref, t_ref, sc2_ref, sh2_ref, w2t_ref, c2b_ref, o_ref):
    xb = x_ref[0].astype(jnp.float32)                               # (C, Lt)
    tb = t_ref[0].astype(jnp.float32)                               # (Cb, Lt)
    h2 = jnp.maximum(tb * sc2_ref[...] + sh2_ref[...], 0.0)         # f32 VPU
    y = jnp.dot(w2t_ref[...], h2.astype(jnp.bfloat16),
                preferred_element_type=jnp.float32)                 # (C, Lt)
    o_ref[0] = (xb + y + c2b_ref[...]).astype(o_ref.dtype)


# --------------------------------------------------------------------------
# wrapper
# --------------------------------------------------------------------------
def residual_layer(x, params, *, kernel_size, dilation, eps=1e-5,
                   l_tile=None, conv_l_tile=None):
    """x: (N, C, L), exactly like PyTorch Conv1d input. Returns (N, C, L)."""
    N, C, L = x.shape
    K = kernel_size
    Cb = params["w1"].shape[2]
    assert K % 2 == 1, "padding='same' path implemented for odd kernel_size"

    f32, bf16 = jnp.float32, jnp.bfloat16
    cnt = float(N * L)
    isz = x.dtype.itemsize

    # ---------------- tiling decisions ----------------
    Lt = l_tile if l_tile is not None else _pick_l_tile(L)
    assert L % Lt == 0
    nLt = L // Lt

    halo = (K - 1) // 2 * dilation
    LtB = conv_l_tile if conv_l_tile is not None else _pick_conv_l_tile(L, halo)
    assert L % LtB == 0
    nLtB = L // LtB
    Hb = 128
    use_halo = (nLtB > 1) and (K > 1)
    if use_halo:
        assert LtB % Hb == 0 and L % Hb == 0 and halo <= Hb, (
            "length-tiled conv needs 128-aligned tiles and halo <= 128")

    # ---------------- pass A: global BN1 statistics ----------------
    s1 = pl.pallas_call(
        _stats_kernel,
        grid=(N, nLt),
        in_specs=[pl.BlockSpec((1, C, Lt), lambda i, j: (i, 0, j))],
        out_specs=pl.BlockSpec((1, 2, C), lambda i, j: (i, 0, 0)),
        out_shape=jax.ShapeDtypeStruct((N, 2, C), f32),
        scratch_shapes=[pltpu.VMEM((2, C), f32)],
        compiler_params=_compiler_params(("parallel", "arbitrary"),
                                         (2 * C * Lt + 4 * C) * 4),
        cost_estimate=pl.CostEstimate(flops=3 * N * C * L, transcendentals=0,
                                      bytes_accessed=N * C * L * isz),
    )(x)
    s1 = jnp.sum(s1, axis=0)                                    # (2, C)
    mean1 = s1[0] / cnt
    var1 = jnp.maximum(s1[1] / cnt - mean1 * mean1, 0.0)        # biased var

    g1 = params["g1"].reshape(C).astype(f32)
    b1 = params["b1"].reshape(C).astype(f32)
    sc1v = g1 * jax.lax.rsqrt(var1 + eps)
    sh1v = b1 - mean1 * sc1v
    sc1 = sc1v.reshape(C, 1)
    sh1 = sh1v.reshape(C, 1)

    # conv1 weight as per-tap (K, Cb, C), bf16 for the MXU.
    w1 = jnp.transpose(params["w1"].astype(f32), (0, 2, 1)).astype(bf16)
    c1b = params["c1b"].reshape(Cb, 1).astype(f32)

    # ---- pass B: BN1+ReLU + dilated conv (+bias) + partial BN2 stats ----
    conv_kernel = _make_conv_kernel(K, dilation, L, LtB, Hb, use_halo)

    in_specs = [pl.BlockSpec((1, C, LtB), lambda i, j: (i, 0, j))]
    operands = [x]
    if use_halo:
        m = LtB // Hb
        n_hblk = L // Hb
        in_specs += [
            pl.BlockSpec((1, C, Hb),
                         lambda i, j: (i, 0, jnp.maximum(j * m - 1, 0))),
            pl.BlockSpec((1, C, Hb),
                         lambda i, j: (i, 0, jnp.minimum((j + 1) * m,
                                                         n_hblk - 1))),
        ]
        operands += [x, x]
    in_specs += [_const_spec((C, 1)), _const_spec((C, 1)),
                 _const_spec((K, Cb, C)), _const_spec((Cb, 1))]
    operands += [sc1, sh1, w1, c1b]

    bb_b = (2 * C * (LtB + 2 * Hb) * 4 + K * Cb * C * 2
            + 2 * Cb * LtB * 2 + 3 * C * LtB * 4)
    t, s2 = pl.pallas_call(
        conv_kernel,
        grid=(N, nLtB),
        in_specs=in_specs,
        out_specs=[
            pl.BlockSpec((1, Cb, LtB), lambda i, j: (i, 0, j)),
            pl.BlockSpec((1, 1, 2, Cb), lambda i, j: (i, j, 0, 0)),
        ],
        out_shape=[
            jax.ShapeDtypeStruct((N, Cb, L), bf16),
            jax.ShapeDtypeStruct((N, nLtB, 2, Cb), f32),
        ],
        compiler_params=_compiler_params(("parallel", "parallel"), bb_b),
        cost_estimate=pl.CostEstimate(
            flops=2 * N * L * K * C * Cb + 6 * N * C * L, transcendentals=0,
            bytes_accessed=N * C * L * isz + N * Cb * L * 2),
    )(*operands)

    # ---------------- global BN2 statistics ----------------
    s2 = jnp.sum(s2, axis=(0, 1))                               # (2, Cb)
    mean2 = s2[0] / cnt
    var2 = jnp.maximum(s2[1] / cnt - mean2 * mean2, 0.0)
    g2 = params["g2"].reshape(Cb).astype(f32)
    b2 = params["b2"].reshape(Cb).astype(f32)
    sc2v = g2 * jax.lax.rsqrt(var2 + eps)
    sh2v = b2 - mean2 * sc2v
    sc2 = sc2v.reshape(Cb, 1)
    sh2 = sh2v.reshape(Cb, 1)

    w2t = jnp.transpose(params["w2"].astype(f32)).astype(bf16)  # (C, Cb)
    c2b = params["c2b"].reshape(C, 1).astype(f32)

    # ------- pass C: BN2 + ReLU + 1x1 conv + bias + residual add -------
    bb_c = 2 * (2 * C * Lt * isz + Cb * Lt * 2) + C * Cb * 2
    out = pl.pallas_call(
        _pointwise_kernel,
        grid=(N, nLt),
        in_specs=[
            pl.BlockSpec((1, C, Lt), lambda i, j: (i, 0, j)),
            pl.BlockSpec((1, Cb, Lt), lambda i, j: (i, 0, j)),
            _const_spec((Cb, 1)),
            _const_spec((Cb, 1)),
            _const_spec((C, Cb)),
            _const_spec((C, 1)),
        ],
        out_specs=pl.BlockSpec((1, C, Lt), lambda i, j: (i, 0, j)),
        out_shape=jax.ShapeDtypeStruct((N, C, L), x.dtype),
        compiler_params=_compiler_params(("parallel", "parallel"), bb_c),
        cost_estimate=pl.CostEstimate(
            flops=2 * N * L * C * Cb + 5 * N * C * L, transcendentals=0,
            bytes_accessed=2 * N * C * L * isz + N * Cb * L * 2),
    )(x, t, sc2, sh2, w2t, c2b)

    return out


# --------------------------------------------------------------------------
# pure-JAX reference (mirrors PyTorch, NCL layout, training-mode BN)
# --------------------------------------------------------------------------
def reference(x, p, K, dil, eps=1e-5):
    m1 = x.mean(axis=(0, 2), keepdims=True)
    v1 = ((x - m1) ** 2).mean(axis=(0, 2), keepdims=True)
    h = (x - m1) / jnp.sqrt(v1 + eps)
    h = h * p["g1"].reshape(1, -1, 1) + p["b1"].reshape(1, -1, 1)
    h = jnp.maximum(h, 0.0)

    w1 = jnp.transpose(p["w1"], (2, 1, 0))                     # (Cout, Cin, K)
    y = jax.lax.conv_general_dilated(
        h, w1, window_strides=(1,), padding="SAME", rhs_dilation=(dil,),
        dimension_numbers=("NCH", "OIH", "NCH"))
    y = y + p["c1b"].reshape(1, -1, 1)

    m2 = y.mean(axis=(0, 2), keepdims=True)
    v2 = ((y - m2) ** 2).mean(axis=(0, 2), keepdims=True)
    h2 = (y - m2) / jnp.sqrt(v2 + eps)
    h2 = h2 * p["g2"].reshape(1, -1, 1) + p["b2"].reshape(1, -1, 1)
    h2 = jnp.maximum(h2, 0.0)

    w2 = jnp.transpose(p["w2"], (1, 0))[:, :, None]            # (Cout, Cin, 1)
    y2 = jax.lax.conv_general_dilated(
        h2, w2, window_strides=(1,), padding="SAME",
        dimension_numbers=("NCH", "OIH", "NCH"))
    y2 = y2 + p["c2b"].reshape(1, -1, 1)
    return x + y2


# --------------------------------------------------------------------------
# self-test
# --------------------------------------------------------------------------
def _run_case(name, *, layer_index, first_dilated_layer, dilation_rate,
              resnet_bottleneck_factor, filters, kernel_size, N, L,
              l_tile=None, conv_l_tile=None):
    shifted = layer_index - first_dilated_layer + 1
    dilation = max(1, dilation_rate ** shifted)
    bottleneck = math.floor(resnet_bottleneck_factor * filters)

    key = jax.random.PRNGKey(0)
    ks = jax.random.split(key, 9)
    x = jax.random.normal(ks[0], (N, filters, L), jnp.float32)
    params = dict(
        g1=1.0 + 0.1 * jax.random.normal(ks[1], (1, filters), jnp.float32),
        b1=0.1 * jax.random.normal(ks[2], (1, filters), jnp.float32),
        w1=0.2 * jax.random.normal(ks[3], (kernel_size, filters, bottleneck),
                                   jnp.float32),
        c1b=0.1 * jax.random.normal(ks[4], (1, bottleneck), jnp.float32),
        g2=1.0 + 0.1 * jax.random.normal(ks[5], (1, bottleneck), jnp.float32),
        b2=0.1 * jax.random.normal(ks[6], (1, bottleneck), jnp.float32),
        g2b=None,
        w2=0.2 * jax.random.normal(ks[7], (bottleneck, filters), jnp.float32),
        c2b=0.1 * jax.random.normal(ks[8], (1, filters), jnp.float32),
    )

    out = residual_layer(x, params, kernel_size=kernel_size, dilation=dilation,
                         l_tile=l_tile, conv_l_tile=conv_l_tile)
    out = jax.block_until_ready(out)

    ref = reference(x, params, kernel_size, dilation)
    assert out.shape == x.shape and out.dtype == x.dtype
    max_err = float(jnp.max(jnp.abs(out - ref)))
    rms_err = float(jnp.sqrt(jnp.mean((out - ref) ** 2)))
    # Tolerance accounts for intentional bf16 MXU operands + bf16 intermediate
    # activation; a real indexing/masking bug would produce O(1) errors.
    assert jnp.allclose(out, ref, atol=8e-2, rtol=8e-2), (
        f"{name}: max abs err {max_err}")
    assert rms_err < 2e-2, f"{name}: rms err {rms_err}"


if __name__ == "__main__":
    # Case 1: module's toy config (whole-L path): dilation=4, bottleneck=4.
    _run_case("toy", layer_index=2, first_dilated_layer=1, dilation_rate=2,
              resnet_bottleneck_factor=0.5, filters=8, kernel_size=3,
              N=2, L=16)
    # Case 2: 128-aligned length; forces the length-tiled conv pass (halo
    # blocks + roll/mask) and the multi-tile BN statistic accumulation.
    _run_case("tiled", layer_index=3, first_dilated_layer=1, dilation_rate=2,
              resnet_bottleneck_factor=0.5, filters=8, kernel_size=3,
              N=2, L=1024, l_tile=256, conv_l_tile=256)
    print("KERNEL_OK")
</pallas_src>

<mosaic_0001>
module attributes {stable_mosaic.version = 11 : i64} {
  func.func @_stats_kernel(%arg0: i32, %arg1: i32, %arg2: memref<1x8x16xf32, #tpu.memory_space<vmem>>, %arg3: memref<1x2x8xf32, #tpu.memory_space<vmem>>, %arg4: memref<2x8xf32, #tpu.memory_space<vmem>>) attributes {dimension_semantics = [#tpu.dimension_semantics<parallel>, #tpu.dimension_semantics<arbitrary>], iteration_bounds = array<i64: 2, 1>, scalar_prefetch = 0 : i64, scratch_operands = 1 : i64, tpu.core_type = #tpu.core_type<tc>, window_params = [{transform_indices = @transform_0, window_bounds = array<i64: 1, 8, 16>}, {transform_indices = @transform_1, window_bounds = array<i64: 1, 2, 8>}]} {
    %c0_i32 = arith.constant 0 : i32
    %0 = arith.cmpi eq, %arg1, %c0_i32 : i32
    %1 = arith.extui %0 : i1 to i32
    %c0_i32_0 = arith.constant 0 : i32
    %2 = arith.cmpi ne, %1, %c0_i32_0 : i32
    scf.if %2 {
      %cst_13 = arith.constant 0.000000e+00 : f32
      %23 = vector.broadcast %cst_13 : f32 to vector<2x8xf32>
      %c0_14 = arith.constant 0 : index
      %c0_15 = arith.constant 0 : index
      %24 = vector.load %arg4[%c0_14, %c0_15] : memref<2x8xf32, #tpu.memory_space<vmem>>, vector<2x8xf32>
      tpu.vector_store %arg4[%c0_14, %c0_15], %23 {strides = array<i32>} : memref<2x8xf32, #tpu.memory_space<vmem>>, vector<2x8xf32>,
    } else {
    }
    %c0 = arith.constant 0 : index
    %c0_1 = arith.constant 0 : index
    %c0_2 = arith.constant 0 : index
    %3 = vector.load %arg2[%c0, %c0_1, %c0_2] : memref<1x8x16xf32, #tpu.memory_space<vmem>>, vector<1x8x16xf32>
    %4 = vector.shape_cast %3 : vector<1x8x16xf32> to vector<8x16xf32>
    %c0_3 = arith.constant 0 : index
    %c0_4 = arith.constant 0 : index
    %5 = vector.load %arg4[%c0_3, %c0_4] : memref<2x8xf32, #tpu.memory_space<vmem>>, vector<1x8xf32>
    %6 = vector.shape_cast %5 : vector<1x8xf32> to vector<8xf32>
    %cst = arith.constant dense<0.000000e+00> : vector<8xf32>
    %7 = vector.multi_reduction <add>, %4, %cst [1] : vector<8x16xf32> to vector<8xf32>
    %8 = arith.addf %6, %7 : vector<8xf32>
    %c0_5 = arith.constant 0 : index
    %c0_6 = arith.constant 0 : index
    %9 = vector.load %arg4[%c0_5, %c0_6] : memref<2x8xf32, #tpu.memory_space<vmem>>, vector<1x8xf32>
    %10 = vector.shape_cast %9 : vector<1x8xf32> to vector<8xf32>
    %11 = vector.shape_cast %8 : vector<8xf32> to vector<1x8xf32>
    tpu.vector_store %arg4[%c0_5, %c0_6], %11 {strides = array<i32>} : memref<2x8xf32, #tpu.memory_space<vmem>>, vector<1x8xf32>,
    %c1 = arith.constant 1 : index
    %c0_7 = arith.constant 0 : index
    %12 = vector.load %arg4[%c1, %c0_7] : memref<2x8xf32, #tpu.memory_space<vmem>>, vector<1x8xf32>
    %13 = vector.shape_cast %12 : vector<1x8xf32> to vector<8xf32>
    %14 = arith.mulf %4, %4 : vector<8x16xf32>
    %cst_8 = arith.constant dense<0.000000e+00> : vector<8xf32>
    %15 = vector.multi_reduction <add>, %14, %cst_8 [1] : vector<8x16xf32> to vector<8xf32>
    %16 = arith.addf %13, %15 : vector<8xf32>
    %c1_9 = arith.constant 1 : index
    %c0_10 = arith.constant 0 : index
    %17 = vector.load %arg4[%c1_9, %c0_10] : memref<2x8xf32, #tpu.memory_space<vmem>>, vector<1x8xf32>
    %18 = vector.shape_cast %17 : vector<1x8xf32> to vector<8xf32>
    %19 = vector.shape_cast %16 : vector<8xf32> to vector<1x8xf32>
    tpu.vector_store %arg4[%c1_9, %c0_10], %19 {strides = array<i32>} : memref<2x8xf32, #tpu.memory_space<vmem>>, vector<1x8xf32>,
    %c0_i32_11 = arith.constant 0 : i32
    %20 = arith.cmpi eq, %arg1, %c0_i32_11 : i32
    %21 = arith.extui %20 : i1 to i32
    %c0_i32_12 = arith.constant 0 : i32
    %22 = arith.cmpi ne, %21, %c0_i32_12 : i32
    scf.if %22 {
      %c0_13 = arith.constant 0 : index
      %c0_14 = arith.constant 0 : index
      %23 = vector.load %arg4[%c0_13, %c0_14] : memref<2x8xf32, #tpu.memory_space<vmem>>, vector<2x8xf32>
      %c0_15 = arith.constant 0 : index
      %c0_16 = arith.constant 0 : index
      %c0_17 = arith.constant 0 : index
      %24 = vector.load %arg3[%c0_15, %c0_16, %c0_17] : memref<1x2x8xf32, #tpu.memory_space<vmem>>, vector<1x2x8xf32>
      %25 = vector.shape_cast %24 : vector<1x2x8xf32> to vector<2x8xf32>
      %26 = vector.shape_cast %23 : vector<2x8xf32> to vector<1x2x8xf32>
      tpu.vector_store %arg3[%c0_15, %c0_16, %c0_17], %26 {strides = array<i32>} : memref<1x2x8xf32, #tpu.memory_space<vmem>>, vector<1x2x8xf32>,
    } else {
    }
    return
  }
  func.func @transform_0(%arg0: i32, %arg1: i32) -> (i32, i32, i32) {
    %c0_i32 = arith.constant 0 : i32
    %c0_i32_0 = arith.constant 0 : i32
    return %arg0, %c0_i32, %arg1 : i32, i32, i32
  }
  func.func @transform_1(%arg0: i32, %arg1: i32) -> (i32, i32, i32) {
    %c0_i32 = arith.constant 0 : i32
    %c0_i32_0 = arith.constant 0 : i32
    %c0_i32_1 = arith.constant 0 : i32
    return %arg0, %c0_i32, %c0_i32_0 : i32, i32, i32
  }
}

</mosaic_0001>

<llo_original>
// kernel: tpu_custom_call.1
$region0: #{tpu_custom_call.1}
  #allocation0 [shape = 'u32[]', space=smem, size = 0x4, offset = 0x4, fixed_abs, tag = 'smem constant byte address 0x4 - core index']
  #allocation1 [shape = 'u32[144,128]{1,0:T(1,128)}', space=vmem, size = 0x12000, scoped, tag = 'internal scratch']
  #allocation2 [shape = 'f32[2,8]{1,0:T(2,128)}', space=vmem, size = 0x400, scoped, tag = 'scratch operand']
  %s0 = inlined_call_operand.hbm [shape: f32[2,8,16], index: 0, kind: input, shape index: {}]
  %s1 = inlined_call_operand.hbm [shape: f32[2,2,8], index: 1, kind: output, shape index: {}]
  %s2 = sld [smem:[#allocation0]]
  $region49: #{tpu_custom_call.1} parent=0
    _
  %s4 = ssub.s32 1, %s2
  %s5 = scalar_select 0, %s4, %s2
  $region1: #{tpu_custom_call.1} parent=0
    #allocation3 [shape = 'u8[8192]{0}', space=vmem, size = 0x2000, scoped, tag = 'input window, operand 0']
    #allocation4 [shape = 's32[2]{0}', space=sflag, size = 0x8, scoped, tag = 'scoped memory for tpu_custom_call.1']
    #allocation5 [shape = 's32[2]{0}', space=sflag, size = 0x8, scoped, tag = 'scoped memory for tpu_custom_call.1']
    #allocation6 [shape = 'u8[2048]{0}', space=vmem, size = 0x800, scoped, tag = 'output window, operand 0']
    %6 = vsyncpa [#allocation4], 0
    %s7 = scalar_lea.sflag [#allocation4], 1
    %8 = vsyncpa %s7, 0
    %9 = vsyncpa [#allocation5], 0
    %s10 = scalar_lea.sflag [#allocation5], 1
    %11 = vsyncpa %s10, 0
    loop: start=0, step=1, limit=4
    $region2: #{tpu_custom_call.1} parent=1 // loop_pre_header
      _
    $region3: #{tpu_custom_call.1} parent=1 // loop_header
      %s13 = sphi 0, %s17
      %p14 = scmp.ge.s32.totalorder %s13, 4
      %s20 = sphi 0, %s32
      %s21 = sphi 0, %s28
      %s22 = sphi 0, %s20
      %s23 = sphi 0, %s21
      %s24 = sphi 0, %s22
      %s25 = sphi 0, %s23
      %s37 = sphi 0, %s39
      %s40 = sphi 0, %s37
      %s41 = sphi 0, %s40
      %s57 = sphi 0, %s41
      %s63 = sphi 0, %s65
      %s66 = sphi 0, %s63
      %s67 = sphi 0, %s66
      %s83 = sphi 0, %s67
    $region4: #{tpu_custom_call.1} parent=1 // loop_header_branch
      %16 = sbr.rel (%p14) target = $region8
    $region5: #{tpu_custom_call.1} parent=1 // loop_body
      %s18 = ssub.s32 %s13, 1
      %s19 = ssub.s32 %s13, 2
      %s26 = sadd.s32 1, %s21
      %p27 = scmp.ge.s32.totalorder %s26, 1
      %s28 = scalar_select %p27, 0, %s26
      %s29 = sadd.s32 1, %s20
      %s30 = scalar_select %p27, %s29, %s20
      %p31 = scmp.ge.s32.totalorder %s30, 2
      %s32 = scalar_select %p31, 0, %s30
      %s33 = ssub.s32 %s20, %s32
      %s34 = ssub.s32 %s21, %s28
      %s35 = sor.u32 %s33, %s34
      %p36 = scmp.eq.s32.totalorder %s35, 0
      %s38 = sadd.s32 %s37, 1
      %s39 = scalar_select %p36, %s37, %s38
      %p42 = pneg %p36
      %p43 = scmp.eq.s32.totalorder %s13, 1
      %p44 = por %p42, %p43
      %p45 = scmp.ne.s32.totalorder %s37, %s40
      %p46 = scmp.eq.s32.totalorder %s13, 0
      %p47 = por %p45, %p46
      %p48 = scmp.ne.s32.totalorder %s37, %s40
      %p49 = scmp.eq.s32.totalorder %s18, 1
      %p50 = por %p48, %p49
      %p51 = scmp.ne.s32.totalorder %s40, %s41
      %p52 = scmp.eq.s32.totalorder %s18, 0
      %p53 = por %p51, %p52
      %p54 = scmp.ne.s32.totalorder %s40, %s41
      %p55 = scmp.eq.s32.totalorder %s19, 1
      %p56 = por %p54, %p55
      %p58 = scmp.ne.s32.totalorder %s41, %s57
      %p59 = scmp.eq.s32.totalorder %s19, 0
      %p60 = por %p58, %p59
      %s61 = ssub.s32 %s20, %s32
      %p62 = scmp.eq.s32.totalorder %s61, 0
      %s64 = sadd.s32 %s63, 1
      %s65 = scalar_select %p62, %s63, %s64
      %p68 = pneg %p62
      %p69 = scmp.eq.s32.totalorder %s13, 1
      %p70 = por %p68, %p69
      %p71 = scmp.ne.s32.totalorder %s63, %s66
      %p72 = scmp.eq.s32.totalorder %s13, 0
      %p73 = por %p71, %p72
      %p74 = scmp.ne.s32.totalorder %s63, %s66
      %p75 = scmp.eq.s32.totalorder %s18, 1
      %p76 = por %p74, %p75
      %p77 = scmp.ne.s32.totalorder %s66, %s67
      %p78 = scmp.eq.s32.totalorder %s18, 0
      %p79 = por %p77, %p78
      %p80 = scmp.ne.s32.totalorder %s66, %s67
      %p81 = scmp.eq.s32.totalorder %s19, 1
      %p82 = por %p80, %p81
      %p84 = scmp.ne.s32.totalorder %s67, %s83
      %p85 = scmp.eq.s32.totalorder %s19, 0
      %p86 = por %p84, %p85
      %p87 = scmp.le.s32.totalorder 1, %s13
      %p88 = scmp.lt.s32.totalorder %s13, 3
      %p89 = pnand %p87, %p88
      %p90 = pneg %p89
      // Predicated region
      $region9: #{tpu_custom_call.1} parent=5 // pred_check
        _
      $region10: #{tpu_custom_call.1} parent=5 // pred_check_branch
        %92 = sbr.rel (%p89) target = $region12
      $region11: #{tpu_custom_call.1} parent=5 // pred_region
        %s93 = ssub.s32 %s13, 1
      $region12: #{tpu_custom_call.1} parent=5 // pred_fallthru
        _
      %p94 = scmp.lt.s32.totalorder %s13, 2
      // Predicated region
      $region13: #{tpu_custom_call.1} parent=5 // pred_check
        %p95 = pneg %p94
      $region14: #{tpu_custom_call.1} parent=5 // pred_check_branch
        %97 = sbr.rel (%p95) target = $region16
      $region15: #{tpu_custom_call.1} parent=5 // pred_region
        // Predicated region
        $region17: #{tpu_custom_call.1} parent=15 // pred_check
          %p98 = pneg %p47
        $region18: #{tpu_custom_call.1} parent=15 // pred_check_branch
          %100 = sbr.rel (%p98) target = $region20
        $region19: #{tpu_custom_call.1} parent=15 // pred_region
          %s101 = sand.u32 %s37, 1
          %s102 = scalar_lea.sflag [#allocation4], %s101
          %s103 = sand.u32 %s37, 1
          %s104 = smul.addr %s103, 8
          %s105 = scalar_lea.vmem [#allocation3], %s104
          %s107 = ssub.s32 128, 128
          %108 = vsyncadd %s102, %s107
          %s109 = sadd.s32 %s21, %s20
          %s110 = smul.addr %s109, 128
          %s111 = scalar_lea.hbm %s0, %s110
          %s113 = sshll.u32 %s105, 4
          %s114 = int_to_ptr.vmem [resolvable:$true] %s113
          %116 = dma.hbm_to_vmem [thread:$0]  %s111, 128, %s114, %s102
        $region20: #{tpu_custom_call.1} parent=15 // pred_fallthru
          _
      $region16: #{tpu_custom_call.1} parent=5 // pred_fallthru
        _
      %p117 = scmp.le.s32.totalorder 1, %s13
      %p118 = scmp.lt.s32.totalorder %s13, 3
      %p119 = pnand %p117, %p118
      %p120 = pneg %p119
      // Predicated region
      $region21: #{tpu_custom_call.1} parent=5 // pred_check
        _
      $region22: #{tpu_custom_call.1} parent=5 // pred_check_branch
        %122 = sbr.rel (%p119) target = $region24
      $region23: #{tpu_custom_call.1} parent=5 // pred_region
        %s123 = ssub.s32 %s13, 1
        %s124 = sand.u32 %s40, 1
        %s125 = scalar_lea.sflag [#allocation4], %s124
        %s126 = sand.u32 %s40, 1
        %s127 = smul.addr %s126, 8
        %s128 = scalar_lea.vmem [#allocation3], %s127
        // Predicated region
        $region25: #{tpu_custom_call.1} parent=23 // pred_check
          %p129 = pneg %p53
        $region26: #{tpu_custom_call.1} parent=23 // pred_check_branch
          %131 = sbr.rel (%p129) target = $region28
        $region27: #{tpu_custom_call.1} parent=23 // pred_region
          %132 = dma.done %s125, 128
        $region28: #{tpu_custom_call.1} parent=23 // pred_fallthru
          _
        %s133 = sand.u32 %s40, 1
        %s134 = scalar_lea.sflag [#allocation4], %s133
        %s135 = sand.u32 %s40, 1
        %s136 = smul.addr %s135, 8
        %s137 = scalar_lea.vmem [#allocation3], %s136
        %p138 = pneg %p53
        %p139 = pneg %p50
        %p140 = pneg %p79
        %p141 = pneg %p76
        %s142 = sand.u32 %s66, 1
        %s143 = scalar_lea.sflag [#allocation5], %s142
        %s144 = sand.u32 %s66, 1
        %s145 = smul.addr %s144, 2
        %s146 = scalar_lea.vmem [#allocation6], %s145
        %p147 = scmp.eq.s32.totalorder %s23, 0
        // Predicated region
        $region29: #{tpu_custom_call.1} parent=23 // pred_check
          %p148 = pneg %p147
        $region30: #{tpu_custom_call.1} parent=23 // pred_check_branch
          %150 = sbr.rel (%p148) target = $region32
        $region31: #{tpu_custom_call.1} parent=23 // pred_region
          %vm151 = vcmask 58368
          %152 = vst.msk [vmem:[#allocation2] sm:$0x3] %vm151, 0.0
        $region32: #{tpu_custom_call.1} parent=23 // pred_fallthru
          _
        %v153 = vld [vmem:[%s128] sm:$0xff]
        %v154 = vld [vmem:[#allocation2] sm:$0x1]
        %vm155 = vcmask 130048
        %v156 = vsel %vm155, %v153, 0.0
        %157 = vadd.xlane.f32.xlu0 %v156
        %v158 = vpop.xlane.xlu0 %157
        %v160 = vlaneseq
        %v161 = vand.u32 %v160, 127
        %v162 = vlaneseq
        %v163 = vshrl.u32 %v162, 7
        %v164 = vsub.s32 %v161, %v163
        %v165 = vrot.slane %v158, %v164
        %v167 = vadd.f32 %v154, %v165
        %vm168 = vcmask 57344
        %169 = vst.msk [vmem:[#allocation2] sm:$0x1] %vm168, %v167
        %v170 = vld [vmem:[#allocation2 + $0x1] sm:$0x1]
        %v171 = vmul.f32 %v153, %v153
        %v172 = vsel %vm155, %v171, 0.0
        %173 = vadd.xlane.f32.xlu0 %v172
        %v174 = vpop.xlane.xlu0 %173
        %v176 = vlaneseq
        %v177 = vshrl.u32 %v176, 7
        %v178 = vsub.s32 %v161, %v177
        %v179 = vrot.slane %v174, %v178
        %v181 = vadd.f32 %v170, %v179
        %182 = vst.msk [vmem:[#allocation2 + $0x1] sm:$0x1] %vm168, %v181
        // Predicated region
        $region33: #{tpu_custom_call.1} parent=23 // pred_check
          %p183 = pneg %p147
        $region34: #{tpu_custom_call.1} parent=23 // pred_check_branch
          %185 = sbr.rel (%p183) target = $region36
        $region35: #{tpu_custom_call.1} parent=23 // pred_region
          %v186 = vld [vmem:[#allocation2] sm:$0x3]
          %vm187 = vcmask 58368
          %188 = vst.msk [vmem:[%s146] sm:$0x3] %vm187, %v186
        $region36: #{tpu_custom_call.1} parent=23 // pred_fallthru
          _
        %s189 = sand.u32 %s66, 1
        %s190 = scalar_lea.sflag [#allocation5], %s189
        %s191 = sand.u32 %s66, 1
        %s192 = smul.addr %s191, 2
        %s193 = scalar_lea.vmem [#allocation6], %s192
        // Predicated region
        $region37: #{tpu_custom_call.1} parent=23 // pred_check
          %p194 = pneg %p76
        $region38: #{tpu_custom_call.1} parent=23 // pred_check_branch
          %196 = sbr.rel (%p194) target = $region40
        $region39: #{tpu_custom_call.1} parent=23 // pred_region
          %s198 = ssub.s32 32, 32
          %199 = vsyncadd %s190, %s198
          %s200 = smul.addr %s22, 32
          %s201 = scalar_lea.hbm %s1, %s200
          %s203 = sshll.u32 %s193, 4
          %s204 = int_to_ptr.vmem [resolvable:$true] %s203
          %206 = dma.vmem_to_hbm [thread:$0]  %s204, 32, %s201, %s190
        $region40: #{tpu_custom_call.1} parent=23 // pred_fallthru
          _
      $region24: #{tpu_custom_call.1} parent=5 // pred_fallthru
        _
      %p207 = scmp.le.s32.totalorder 2, %s13
      // Predicated region
      $region41: #{tpu_custom_call.1} parent=5 // pred_check
        %p208 = pneg %p207
      $region42: #{tpu_custom_call.1} parent=5 // pred_check_branch
        %210 = sbr.rel (%p208) target = $region44
      $region43: #{tpu_custom_call.1} parent=5 // pred_region
        %s211 = ssub.s32 %s13, 2
        // Predicated region
        $region45: #{tpu_custom_call.1} parent=43 // pred_check
          %p212 = pneg %p82
        $region46: #{tpu_custom_call.1} parent=43 // pred_check_branch
          %214 = sbr.rel (%p212) target = $region48
        $region47: #{tpu_custom_call.1} parent=43 // pred_region
          %s215 = sand.u32 %s67, 1
          %s216 = scalar_lea.sflag [#allocation5], %s215
          %s217 = sand.u32 %s67, 1
          %s218 = smul.addr %s217, 2
          %s219 = scalar_lea.vmem [#allocation6], %s218
          %220 = dma.done %s216, 32
        $region48: #{tpu_custom_call.1} parent=43 // pred_fallthru
          _
      $region44: #{tpu_custom_call.1} parent=5 // pred_fallthru
        _
    $region6: #{tpu_custom_call.1} parent=1 // loop_footer
      %s17 = sadd.s32 1, %s13
    $region7: #{tpu_custom_call.1} parent=1 // loop_footer_branch
      %12 = sbr.rel target = $region3
    $region8: #{tpu_custom_call.1} parent=1 // loop_exit
      _
    %221 = vsyncpa [#allocation4], 1
    %s222 = scalar_lea.sflag [#allocation4], 1
    %223 = vsyncpa %s222, 1
    %224 = vsyncpa [#allocation5], 1
    %s225 = scalar_lea.sflag [#allocation5], 1
    %226 = vsyncpa %s225, 1

</llo_original>
